<compile_context>
chip_gen: v7x
topology: tpu7x:2x2x1
jax: 0.10.0
libtpu: 0.0.40
codegen_flags: <defaults>
</compile_context>

<pallas_src>
import jax
import jax.numpy as jnp
import numpy as np
from jax.experimental import pallas as pl
from jax.experimental.pallas import tpu as pltpu

HIDDEN = 32   # A3TGCN out_channels, fixed by the module
LANES = 128   # lane width for the padded output / final linear


def _rgcn_kernel(x_ref, a_ref, g_ref, p_ref, lin_ref, out_ref):
    """Single-program whole-array kernel.

    x_ref   : (N, T)        node features per period
    a_ref   : (N, N)        GCN-normalized dense adjacency A_hat
    g_ref   : (2T+2, T*32)  rows [0:T)=Gz, [T:2T)=Gh (block-diag expansion of
                            the folded gate vectors), row 2T = Cz, 2T+1 = Ch
                            (tiled folded gate biases)
    p_ref   : (T*32, 32)    attention contraction: P[t*32+k, k'] = probs[t]*d(k,k')
    lin_ref : (40, 128)     rows [0:32) = Wlin padded to 128 lanes, row 32 = blin
    out_ref : (N, 128)      lane-dense output; column 0 holds the result
    """
    n, t = x_ref.shape
    h = HIDDEN

    x = x_ref[...]                                                   # (N, T)
    a = a_ref[...]                                                   # (N, N)
    # A_hat @ X for all periods at once (single MXU op).
    ax = jnp.dot(a, x, preferred_element_type=jnp.float32)           # (N, T)

    gz = g_ref[0:t, :]                                               # (T, T*H)
    gh = g_ref[t:2 * t, :]                                           # (T, T*H)
    cz = g_ref[2 * t:2 * t + 1, :]                                   # (1, T*H)
    ch = g_ref[2 * t + 1:2 * t + 2, :]                               # (1, T*H)

    # Vectorized over all periods: column t*H+k of z_pre is ax[:, t]*gz[k]+cz[k].
    # The expansion matmuls ride the MXU slot while the VPU/EUP do the gates.
    z_pre = jnp.dot(ax, gz, preferred_element_type=jnp.float32) + cz  # (N, T*H)
    h_pre = jnp.dot(ax, gh, preferred_element_type=jnp.float32) + ch  # (N, T*H)

    z = jax.nn.sigmoid(z_pre)
    h_tilde = jnp.tanh(h_pre)
    # H0 == 0  =>  r gate is dead and H_t = (1 - Z) * H_tilde.
    h_all = (1.0 - z) * h_tilde                                       # (N, T*H)

    # Attention-weighted sum over periods as one contraction.
    h_accum = jnp.dot(h_all, p_ref[...], preferred_element_type=jnp.float32)  # (N, H)

    h_relu = jnp.maximum(h_accum, 0.0)
    # Final Linear(32, 1), lane-padded to 128 so the store is unmasked.
    out = (jnp.dot(h_relu, lin_ref[0:h, :], preferred_element_type=jnp.float32)
           + lin_ref[h:h + 1, :])
    out_ref[...] = out.astype(out_ref.dtype)                          # (N, 128)


def dense_gcn_norm(edge_index, edge_weight, num_nodes):
    """Dense A_hat = D^{-1/2} (A + I) D^{-1/2}, matching PyG gcn_norm.

    PyG aggregates messages source->target: out[dst] += norm * x[src], so the
    dense operator is A[dst, src]."""
    src, dst = edge_index[0], edge_index[1]
    adj = jnp.zeros((num_nodes, num_nodes), jnp.float32)
    adj = adj.at[dst, src].add(edge_weight.astype(jnp.float32))
    adj = adj + jnp.eye(num_nodes, dtype=jnp.float32)   # add self loops, weight 1
    deg = jnp.sum(adj, axis=1)
    dinv = jnp.where(deg > 0, 1.0 / jnp.sqrt(deg), 0.0)
    return dinv[:, None] * adj * dinv[None, :]


def fold_params(params, periods):
    """One-time parameter folding (plain JAX, outside the kernel).

    Folds the rank-1 GCNConv into the gate linears, drops the dead r gate and
    all H0 matmuls, precomputes softmax(attention), and packs everything into
    three VMEM slabs (one DMA each)."""
    H = HIDDEN
    gz = params["wz"] @ params["lwz"][:H]                       # (1, H)
    cz = params["bz"] @ params["lwz"][:H] + params["lbz"]       # (1, H)
    gh = params["wh"] @ params["lwh"][:H]                       # (1, H)
    ch = params["bh"] @ params["lwh"][:H] + params["lbh"]       # (1, H)

    eye_t = jnp.eye(periods, dtype=jnp.float32)
    Gz = jnp.kron(eye_t, gz)                                    # (T, T*H)
    Gh = jnp.kron(eye_t, gh)                                    # (T, T*H)
    Cz = jnp.tile(cz, (1, periods))                             # (1, T*H)
    Ch = jnp.tile(ch, (1, periods))                             # (1, T*H)
    g_slab = jnp.concatenate([Gz, Gh, Cz, Ch], axis=0)          # (2T+2, T*H)

    probs = jax.nn.softmax(params["att"], axis=-1)              # (1, T)
    p_mat = jnp.kron(probs.reshape(periods, 1),
                     jnp.eye(H, dtype=jnp.float32))             # (T*H, H)

    lin_slab = jnp.zeros((H + 8, LANES), jnp.float32)           # lane-padded Wlin/blin
    lin_slab = lin_slab.at[:H, :1].set(params["wlin"])
    lin_slab = lin_slab.at[H, 0].set(params["blin"][0, 0])
    return g_slab, p_mat, lin_slab


def recurrent_gcn_forward(x, edge_index, edge_weight, params):
    n, periods = x.shape
    a_hat = dense_gcn_norm(edge_index, edge_weight, n)
    g_slab, p_mat, lin_slab = fold_params(params, periods)
    args = (x.astype(jnp.float32), a_hat, g_slab, p_mat, lin_slab)
    out_pad = pl.pallas_call(
        _rgcn_kernel,
        out_shape=jax.ShapeDtypeStruct((n, LANES), jnp.float32),
        in_specs=[pl.BlockSpec(memory_space=pltpu.MemorySpace.VMEM)] * len(args),
        out_specs=pl.BlockSpec(memory_space=pltpu.MemorySpace.VMEM),
    )(*args)
    return out_pad[:, :1]                                       # (N, 1)


def init_params(key, periods):
    """Deterministic synthetic parameters matching the module's shapes."""
    ks = jax.random.split(key, 18)
    u = lambda k, shape, s=0.2: jax.random.uniform(k, shape, jnp.float32, -s, s)
    return {
        # GCNConv weights (in_channels=1 -> row vector) and biases, gates z/r/h
        "wz": u(ks[0], (1, HIDDEN)), "bz": u(ks[1], (1, HIDDEN)),
        "wr": u(ks[2], (1, HIDDEN)), "br": u(ks[3], (1, HIDDEN)),
        "wh": u(ks[4], (1, HIDDEN)), "bh": u(ks[5], (1, HIDDEN)),
        # TGCN gate linears: torch Linear(64, 32) -> pass W^T as (64, 32)
        "lwz": u(ks[6], (2 * HIDDEN, HIDDEN)), "lbz": u(ks[7], (1, HIDDEN)),
        "lwr": u(ks[8], (2 * HIDDEN, HIDDEN)), "lbr": u(ks[9], (1, HIDDEN)),
        "lwh": u(ks[10], (2 * HIDDEN, HIDDEN)), "lbh": u(ks[11], (1, HIDDEN)),
        # attention logits over periods (torch.nn.init.uniform_ -> [0, 1))
        "att": jax.random.uniform(ks[12], (1, periods), jnp.float32),
        # final Linear(32, 1): pass W^T as (32, 1), bias (1, 1)
        "wlin": u(ks[13], (HIDDEN, 1)), "blin": u(ks[14], (1, 1)),
    }


def reference_forward(x, edge_index, edge_weight, params):
    """Pure-JAX reference mirroring the *unoptimized* PyTorch forward semantics
    (full r gate, concat with H, etc.) — validates the algebraic folding."""
    n, periods = x.shape
    a_hat = dense_gcn_norm(edge_index, edge_weight, n)
    ax = a_hat @ x
    probs = jax.nn.softmax(params["att"], axis=-1)
    h0 = jnp.zeros((n, HIDDEN), jnp.float32)
    h_accum = jnp.zeros((n, HIDDEN), jnp.float32)
    for t in range(periods):
        ax_t = ax[:, t:t + 1]
        conv_z = ax_t * params["wz"] + params["bz"]
        conv_r = ax_t * params["wr"] + params["br"]
        conv_h = ax_t * params["wh"] + params["bh"]
        z = jax.nn.sigmoid(jnp.concatenate([conv_z, h0], axis=1) @ params["lwz"] + params["lbz"])
        r = jax.nn.sigmoid(jnp.concatenate([conv_r, h0], axis=1) @ params["lwr"] + params["lbr"])
        h_tilde = jnp.tanh(jnp.concatenate([conv_h, h0 * r], axis=1) @ params["lwh"] + params["lbh"])
        h_new = z * h0 + (1.0 - z) * h_tilde
        h_accum = h_accum + probs[:, t:t + 1] * h_new
    return jnp.maximum(h_accum, 0.0) @ params["wlin"] + params["blin"]


if __name__ == "__main__":
    N_NODES = 16     # number of graph nodes
    PERIODS = 8      # temporal periods (node_features = 1, forced by x.view(N,1,T))
    N_EDGES = 40

    key = jax.random.PRNGKey(0)
    k_x, k_src, k_off, k_w, k_p = jax.random.split(key, 5)

    x = jax.random.normal(k_x, (N_NODES, PERIODS), jnp.float32)
    src = jax.random.randint(k_src, (N_EDGES,), 0, N_NODES)
    off = jax.random.randint(k_off, (N_EDGES,), 1, N_NODES)   # avoid self-loops
    dst = (src + off) % N_NODES
    edge_index = jnp.stack([src, dst]).astype(jnp.int32)      # (2, E)
    edge_weight = jax.random.uniform(k_w, (N_EDGES,), jnp.float32, 0.1, 1.0)

    params = init_params(k_p, PERIODS)

    out = recurrent_gcn_forward(x, edge_index, edge_weight, params)
    out = jax.block_until_ready(out)

    ref = jax.block_until_ready(reference_forward(x, edge_index, edge_weight, params))
    np.testing.assert_allclose(np.asarray(out), np.asarray(ref), rtol=1e-4, atol=1e-5)

    print("KERNEL_OK")
</pallas_src>

<mosaic_0001>
module attributes {stable_mosaic.version = 11 : i64} {
  func.func @_rgcn_kernel(%arg0: memref<16x8xf32, #tpu.memory_space<vmem>>, %arg1: memref<16x16xf32, #tpu.memory_space<vmem>>, %arg2: memref<18x256xf32, #tpu.memory_space<vmem>>, %arg3: memref<256x32xf32, #tpu.memory_space<vmem>>, %arg4: memref<40x128xf32, #tpu.memory_space<vmem>>, %arg5: memref<16x128xf32, #tpu.memory_space<vmem>>) attributes {dimension_semantics = [], scalar_prefetch = 0 : i64, scratch_operands = 0 : i64, tpu.core_type = #tpu.core_type<tc>} {
    %c0 = arith.constant 0 : index
    %c0_0 = arith.constant 0 : index
    %0 = vector.load %arg0[%c0, %c0_0] : memref<16x8xf32, #tpu.memory_space<vmem>>, vector<16x8xf32>
    %c0_1 = arith.constant 0 : index
    %c0_2 = arith.constant 0 : index
    %1 = vector.load %arg1[%c0_1, %c0_2] : memref<16x16xf32, #tpu.memory_space<vmem>>, vector<16x16xf32>
    %cst = arith.constant dense<0.000000e+00> : vector<16x8xf32>
    %2 = tpu.matmul %1, %0, %cst {dimension_numbers = #tpu.dot_dimension_numbers<[1], [0], [0], [1], [0, 0, 1, 1], [], []>} : vector<16x16xf32>, vector<16x8xf32>, vector<16x8xf32> -> vector<16x8xf32>
    %c0_3 = arith.constant 0 : index
    %c0_4 = arith.constant 0 : index
    %3 = vector.load %arg2[%c0_3, %c0_4] : memref<18x256xf32, #tpu.memory_space<vmem>>, vector<8x256xf32>
    %c8 = arith.constant 8 : index
    %c0_5 = arith.constant 0 : index
    %4 = vector.load %arg2[%c8, %c0_5] : memref<18x256xf32, #tpu.memory_space<vmem>>, vector<8x256xf32>
    %c16 = arith.constant 16 : index
    %c0_6 = arith.constant 0 : index
    %5 = vector.load %arg2[%c16, %c0_6] : memref<18x256xf32, #tpu.memory_space<vmem>>, vector<1x256xf32>
    %c17 = arith.constant 17 : index
    %c0_7 = arith.constant 0 : index
    %6 = vector.load %arg2[%c17, %c0_7] : memref<18x256xf32, #tpu.memory_space<vmem>>, vector<1x256xf32>
    %cst_8 = arith.constant dense<0.000000e+00> : vector<16x256xf32>
    %7 = tpu.matmul %2, %3, %cst_8 {dimension_numbers = #tpu.dot_dimension_numbers<[1], [0], [0], [1], [0, 0, 1, 1], [], []>} : vector<16x8xf32>, vector<8x256xf32>, vector<16x256xf32> -> vector<16x256xf32>
    %8 = vector.broadcast %5 : vector<1x256xf32> to vector<16x256xf32>
    %9 = arith.addf %7, %8 : vector<16x256xf32>
    %cst_9 = arith.constant dense<0.000000e+00> : vector<16x256xf32>
    %10 = tpu.matmul %2, %4, %cst_9 {dimension_numbers = #tpu.dot_dimension_numbers<[1], [0], [0], [1], [0, 0, 1, 1], [], []>} : vector<16x8xf32>, vector<8x256xf32>, vector<16x256xf32> -> vector<16x256xf32>
    %11 = vector.broadcast %6 : vector<1x256xf32> to vector<16x256xf32>
    %12 = arith.addf %10, %11 : vector<16x256xf32>
    %13 = arith.negf %9 : vector<16x256xf32>
    %14 = math.exp %13 : vector<16x256xf32>
    %cst_10 = arith.constant 1.000000e+00 : f32
    %15 = vector.broadcast %cst_10 : f32 to vector<16x256xf32>
    %16 = arith.addf %15, %14 : vector<16x256xf32>
    %17 = arith.divf %15, %16 : vector<16x256xf32>
    %18 = math.tanh %12 : vector<16x256xf32>
    %cst_11 = arith.constant 1.000000e+00 : f32
    %19 = vector.broadcast %cst_11 : f32 to vector<16x256xf32>
    %20 = arith.subf %19, %17 : vector<16x256xf32>
    %21 = arith.mulf %20, %18 : vector<16x256xf32>
    %c0_12 = arith.constant 0 : index
    %c0_13 = arith.constant 0 : index
    %22 = vector.load %arg3[%c0_12, %c0_13] : memref<256x32xf32, #tpu.memory_space<vmem>>, vector<256x32xf32>
    %cst_14 = arith.constant dense<0.000000e+00> : vector<16x32xf32>
    %23 = tpu.matmul %21, %22, %cst_14 {dimension_numbers = #tpu.dot_dimension_numbers<[1], [0], [0], [1], [0, 0, 1, 1], [], []>} : vector<16x256xf32>, vector<256x32xf32>, vector<16x32xf32> -> vector<16x32xf32>
    %cst_15 = arith.constant 0.000000e+00 : f32
    %24 = vector.broadcast %cst_15 : f32 to vector<16x32xf32>
    %25 = arith.maximumf %23, %24 : vector<16x32xf32>
    %c0_16 = arith.constant 0 : index
    %c0_17 = arith.constant 0 : index
    %26 = vector.load %arg4[%c0_16, %c0_17] : memref<40x128xf32, #tpu.memory_space<vmem>>, vector<32x128xf32>
    %cst_18 = arith.constant dense<0.000000e+00> : vector<16x128xf32>
    %27 = tpu.matmul %25, %26, %cst_18 {dimension_numbers = #tpu.dot_dimension_numbers<[1], [0], [0], [1], [0, 0, 1, 1], [], []>} : vector<16x32xf32>, vector<32x128xf32>, vector<16x128xf32> -> vector<16x128xf32>
    %c32 = arith.constant 32 : index
    %c0_19 = arith.constant 0 : index
    %28 = vector.load %arg4[%c32, %c0_19] : memref<40x128xf32, #tpu.memory_space<vmem>>, vector<1x128xf32>
    %29 = vector.broadcast %28 : vector<1x128xf32> to vector<16x128xf32>
    %30 = arith.addf %27, %29 : vector<16x128xf32>
    %c0_20 = arith.constant 0 : index
    %c0_21 = arith.constant 0 : index
    %31 = vector.load %arg5[%c0_20, %c0_21] : memref<16x128xf32, #tpu.memory_space<vmem>>, vector<16x128xf32>
    tpu.vector_store %arg5[%c0_20, %c0_21], %30 {strides = array<i32>} : memref<16x128xf32, #tpu.memory_space<vmem>>, vector<16x128xf32>,
    return
  }
}

</mosaic_0001>

<llo_original>
// kernel: tpu_custom_call.1
$region0: #{tpu_custom_call.1}
  #allocation0 [shape = 'u32[]', space=smem, size = 0x4, offset = 0x4, fixed_abs, tag = 'smem constant byte address 0x4 - core index']
  #allocation1 [shape = 'u32[144,128]{1,0:T(1,128)}', space=vmem, size = 0x12000, scoped, tag = 'internal scratch']
  %s0 = inlined_call_operand.vmem [shape: f32[16,8], index: 0, kind: input, shape index: {}]
  %s1 = inlined_call_operand.vmem [shape: f32[16,16], index: 1, kind: input, shape index: {}]
  %s2 = inlined_call_operand.vmem [shape: f32[18,256], index: 2, kind: input, shape index: {}]
  %s3 = inlined_call_operand.vmem [shape: f32[256,32], index: 3, kind: input, shape index: {}]
  %s4 = inlined_call_operand.vmem [shape: f32[40,128], index: 4, kind: input, shape index: {}]
  %s5 = inlined_call_operand.hbm [shape: f32[16,128], index: 5, kind: output, shape index: {}]
  %s6 = sld [smem:[#allocation0]]
  $region30: #{tpu_custom_call.1} parent=0
    _
  %s8 = ssub.s32 1, %s6
  %s9 = scalar_select 0, %s8, %s6
  $region1: #{tpu_custom_call.1} parent=0
    #allocation2 [shape = 'u8[8192]{0}', space=vmem, size = 0x2000, scoped, tag = 'output window, operand 0, single buffered']
    #allocation3 [shape = 's32[1]{0}', space=sflag, size = 0x4, scoped, tag = 'scoped memory for tpu_custom_call.1']
    %10 = vsyncpa [#allocation3], 0
    // Predicated region
    $region2: #{tpu_custom_call.1} parent=1 // pred_check
      _
    $region3: #{tpu_custom_call.1} parent=1 // pred_check_branch
      %12 = sbr.rel (0) target = $region5
    $region4: #{tpu_custom_call.1} parent=1 // pred_region
      _
    $region5: #{tpu_custom_call.1} parent=1 // pred_fallthru
      _
    // Predicated region
    $region6: #{tpu_custom_call.1} parent=1 // pred_check
      _
    $region7: #{tpu_custom_call.1} parent=1 // pred_check_branch
      %14 = sbr.rel (0) target = $region9
    $region8: #{tpu_custom_call.1} parent=1 // pred_region
      _
    $region9: #{tpu_custom_call.1} parent=1 // pred_fallthru
      _
    // Predicated region
    $region10: #{tpu_custom_call.1} parent=1 // pred_check
      _
    $region11: #{tpu_custom_call.1} parent=1 // pred_check_branch
      %16 = sbr.rel (0) target = $region13
    $region12: #{tpu_custom_call.1} parent=1 // pred_region
      _
    $region13: #{tpu_custom_call.1} parent=1 // pred_fallthru
      _
    // Predicated region
    $region14: #{tpu_custom_call.1} parent=1 // pred_check
      _
    $region15: #{tpu_custom_call.1} parent=1 // pred_check_branch
      %18 = sbr.rel (0) target = $region17
    $region16: #{tpu_custom_call.1} parent=1 // pred_region
      _
    $region17: #{tpu_custom_call.1} parent=1 // pred_fallthru
      _
    // Predicated region
    $region18: #{tpu_custom_call.1} parent=1 // pred_check
      _
    $region19: #{tpu_custom_call.1} parent=1 // pred_check_branch
      %20 = sbr.rel (0) target = $region21
    $region20: #{tpu_custom_call.1} parent=1 // pred_region
      _
    $region21: #{tpu_custom_call.1} parent=1 // pred_fallthru
      _
    %v21 = vld [vmem:[%s0] sm:$0xff]
    %v22 = vld [vmem:[%s0 + $0x8] sm:$0xff]
    %v23 = vld [vmem:[%s1] sm:$0xff]
    %v24 = vld [vmem:[%s1 + $0x8] sm:$0xff]
    %vm25 = vcmask 130048
    %v27 = vsel %vm25, %v23, 0
    %v30 = vsel %vm25, %v24, 0
    %32 = vmatprep.subr.mxu0 0.0
    %33 = vmatpush1.msra.mxu0 %v21
    %34 = vmatprep.subr.mxu0 0.0
    %35 = vmatpush1.msra.mxu0 %v22
    %36 = vmatprep.subr.mxu0 0.0
    %37 = vmatpush1.msra.mxu0 0.0
    %38 = vmatprep.subr.mxu0 0.0
    %39 = vmatpush1.msra.mxu0 0.0
    %40 = vmatprep.subr.mxu0 0.0
    %41 = vmatpush1.msra.mxu0 0.0
    %42 = vmatprep.subr.mxu0 0.0
    %43 = vmatpush1.msra.mxu0 0.0
    %44 = vmatprep.subr.mxu0 0.0
    %45 = vmatpush1.msra.mxu0 0.0
    %46 = vmatprep.subr.mxu0 0.0
    %47 = vmatpush1.msra.mxu0 0.0
    %48 = vmatprep.subr.mxu0 0.0
    %49 = vmatpush1.msra.mxu0 0.0
    %50 = vmatprep.subr.mxu0 0.0
    %51 = vmatpush1.msra.mxu0 0.0
    %52 = vmatprep.subr.mxu0 0.0
    %53 = vmatpush1.msra.mxu0 0.0
    %54 = vmatprep.subr.mxu0 0.0
    %55 = vmatpush1.msra.mxu0 0.0
    %56 = vmatprep.subr.mxu0 0.0
    %57 = vmatpush1.msra.mxu0 0.0
    %58 = vmatprep.subr.mxu0 0.0
    %59 = vmatpush1.msra.mxu0 0.0
    %60 = vmatprep.subr.mxu0 0.0
    %61 = vmatpush1.msra.mxu0 0.0
    %62 = vmatprep.subr.mxu0 0.0
    %63 = vmatpush1.msra.mxu0 0.0
    %64 = vmatprep.subr.mxu0 0.0
    %65 = vmatpush1.msra.mxu0 0.0
    %66 = vmatprep.subr.mxu0 0.0
    %67 = vmatpush1.msra.mxu0 0.0
    %68 = vmatprep.subr.mxu0 0.0
    %69 = vmatpush1.msra.mxu0 0.0
    %70 = vmatprep.subr.mxu0 0.0
    %71 = vmatpush1.msra.mxu0 0.0
    %72 = vmatprep.subr.mxu0 0.0
    %73 = vmatpush1.msra.mxu0 0.0
    %74 = vmatprep.subr.mxu0 0.0
    %75 = vmatpush1.msra.mxu0 0.0
    %76 = vmatprep.subr.mxu0 0.0
    %77 = vmatpush1.msra.mxu0 0.0
    %78 = vmatprep.subr.mxu0 0.0
    %79 = vmatpush1.msra.mxu0 0.0
    %80 = vmatprep.subr.mxu0 0.0
    %81 = vmatpush1.msra.mxu0 0.0
    %82 = vmatprep.subr.mxu0 0.0
    %83 = vmatpush1.msra.mxu0 0.0
    %84 = vmatprep.subr.mxu0 0.0
    %85 = vmatpush1.msra.mxu0 0.0
    %86 = vmatprep.subr.mxu0 0.0
    %87 = vmatpush1.msra.mxu0 0.0
    %88 = vmatprep.subr.mxu0 0.0
    %89 = vmatpush1.msra.mxu0 0.0
    %90 = vmatprep.subr.mxu0 0.0
    %91 = vmatpush1.msra.mxu0 0.0
    %92 = vmatprep.subr.mxu0 0.0
    %93 = vmatpush1.msra.mxu0 0.0
    %94 = vmatprep.subr.mxu0 0.0
    %95 = vmatpush1.msra.mxu0 0.0
    %96 = vmatprep.mubr.f32.mxu0 0.0
    %97 = vmatmul.mubr.f32.gmra.mrb[0].mxu0 %v27
    %v98 = vpop.f32.mrb[0].mxu0
    %v99 = vadd.f32 0.0, %v98
    %v100 = vpop.f32.mrb[0].mxu0
    %101 = vmatprep.mubr.f32.mxu0 0.0
    %102 = vmatmul.mubr.f32.gmra.mrb[0].mxu0 %v30
    %v103 = vpop.f32.mrb[0].mxu0
    %v104 = vadd.f32 0.0, %v103
    %v105 = vpop.f32.mrb[0].mxu0
    %106 = vdwg.mxu0
    %v107 = vld [vmem:[%s2] sm:$0xff]
    %v108 = vld [vmem:[%s2 + $0x8] sm:$0xff]
    %v109 = vld [vmem:[%s2 + $0x10] sm:$0xff]
    %v110 = vld [vmem:[%s2 + $0x18] sm:$0xff]
    %s111 = scalar_lea.vmem %s2, 32
    %v112 = vld [vmem:[%s111] ss:$8 sm:$0x3]
    %s113 = scalar_lea.vmem %s2, 33
    %v114 = vld [vmem:[%s113] ss:$8 sm:$0x3]
    %v116 = vlaneseq
    %v117 = vshrl.u32 %v116, 7
    %v118 = vsub.s32 0, %v117
    %v119 = vrot.slane %v112, %v118
    %v120 = vlaneseq
    %v121 = vshrl.u32 %v120, 7
    %v122 = vsub.s32 1, %v121
    %v123 = vrot.slane %v112, %v122
    %vm126 = vcmask 64512
    %v128 = vsel %vm126, %v99, 0
    %v131 = vsel %vm126, %v104, 0
    %133 = vmatprep.subr.mxu0 %v108
    %134 = vmatpush1.msra.mxu0 %v107
    %135 = vmatprep.subr.mxu0 0.0
    %136 = vmatpush1.msra.mxu0 0.0
    %137 = vmatprep.subr.mxu0 0.0
    %138 = vmatpush1.msra.mxu0 0.0
    %139 = vmatprep.subr.mxu0 0.0
    %140 = vmatpush1.msra.mxu0 0.0
    %141 = vmatprep.subr.mxu0 0.0
    %142 = vmatpush1.msra.mxu0 0.0
    %143 = vmatprep.subr.mxu0 0.0
    %144 = vmatpush1.msra.mxu0 0.0
    %145 = vmatprep.subr.mxu0 0.0
    %146 = vmatpush1.msra.mxu0 0.0
    %147 = vmatprep.subr.mxu0 0.0
    %148 = vmatpush1.msra.mxu0 0.0
    %149 = vmatprep.subr.mxu0 0.0
    %150 = vmatpush1.msra.mxu0 0.0
    %151 = vmatprep.subr.mxu0 0.0
    %152 = vmatpush1.msra.mxu0 0.0
    %153 = vmatprep.subr.mxu0 0.0
    %154 = vmatpush1.msra.mxu0 0.0
    %155 = vmatprep.subr.mxu0 0.0
    %156 = vmatpush1.msra.mxu0 0.0
    %157 = vmatprep.subr.mxu0 0.0
    %158 = vmatpush1.msra.mxu0 0.0
    %159 = vmatprep.subr.mxu0 0.0
    %160 = vmatpush1.msra.mxu0 0.0
    %161 = vmatprep.subr.mxu0 0.0
    %162 = vmatpush1.msra.mxu0 0.0
    %163 = vmatprep.subr.mxu0 0.0
    %164 = vmatpush1.msra.mxu0 0.0
    %165 = vmatprep.subr.mxu0 0.0
    %166 = vmatpush1.msra.mxu0 0.0
    %167 = vmatprep.subr.mxu0 0.0
    %168 = vmatpush1.msra.mxu0 0.0
    %169 = vmatprep.subr.mxu0 0.0
    %170 = vmatpush1.msra.mxu0 0.0
    %171 = vmatprep.subr.mxu0 0.0
    %172 = vmatpush1.msra.mxu0 0.0
    %173 = vmatprep.subr.mxu0 0.0
    %174 = vmatpush1.msra.mxu0 0.0
    %175 = vmatprep.subr.mxu0 0.0
    %176 = vmatpush1.msra.mxu0 0.0
    %177 = vmatprep.subr.mxu0 0.0
    %178 = vmatpush1.msra.mxu0 0.0
    %179 = vmatprep.subr.mxu0 0.0
    %180 = vmatpush1.msra.mxu0 0.0
    %181 = vmatprep.subr.mxu0 0.0
    %182 = vmatpush1.msra.mxu0 0.0
    %183 = vmatprep.subr.mxu0 0.0
    %184 = vmatpush1.msra.mxu0 0.0
    %185 = vmatprep.subr.mxu0 0.0
    %186 = vmatpush1.msra.mxu0 0.0
    %187 = vmatprep.subr.mxu0 0.0
    %188 = vmatpush1.msra.mxu0 0.0
    %189 = vmatprep.subr.mxu0 0.0
    %190 = vmatpush1.msra.mxu0 0.0
    %191 = vmatprep.subr.mxu0 0.0
    %192 = vmatpush1.msra.mxu0 0.0
    %193 = vmatprep.subr.mxu0 0.0
    %194 = vmatpush1.msra.mxu0 0.0
    %195 = vmatprep.subr.mxu0 0.0
    %196 = vmatpush1.msra.mxu0 0.0
    %197 = vmatprep.mubr.f32.mxu0 0.0
    %198 = vmatmul.mubr.f32.gmra.mrb[0].mxu0 %v128
    %v199 = vpop.f32.mrb[0].mxu0
    %v200 = vadd.f32 %v119, %v199
    %v201 = vpop.f32.mrb[0].mxu0
    %v202 = vadd.f32 %v123, %v201
    %203 = vmatprep.mubr.f32.mxu0 0.0
    %204 = vmatmul.mubr.f32.gmra.mrb[0].mxu0 %v131
    %v205 = vpop.f32.mrb[0].mxu0
    %v206 = vadd.f32 %v119, %v205
    %v207 = vpop.f32.mrb[0].mxu0
    %v208 = vadd.f32 %v123, %v207
    %209 = vdwg.mxu0
    %v211 = vlaneseq
    %v212 = vshrl.u32 %v211, 7
    %v213 = vsub.s32 0, %v212
    %v214 = vrot.slane %v114, %v213
    %v215 = vlaneseq
    %v216 = vshrl.u32 %v215, 7
    %v217 = vsub.s32 1, %v216
    %v218 = vrot.slane %v114, %v217
    %221 = vmatprep.subr.mxu0 %v110
    %222 = vmatpush1.msra.mxu0 %v109
    %223 = vmatprep.subr.mxu0 0.0
    %224 = vmatpush1.msra.mxu0 0.0
    %225 = vmatprep.subr.mxu0 0.0
    %226 = vmatpush1.msra.mxu0 0.0
    %227 = vmatprep.subr.mxu0 0.0
    %228 = vmatpush1.msra.mxu0 0.0
    %229 = vmatprep.subr.mxu0 0.0
    %230 = vmatpush1.msra.mxu0 0.0
    %231 = vmatprep.subr.mxu0 0.0
    %232 = vmatpush1.msra.mxu0 0.0
    %233 = vmatprep.subr.mxu0 0.0
    %234 = vmatpush1.msra.mxu0 0.0
    %235 = vmatprep.subr.mxu0 0.0
    %236 = vmatpush1.msra.mxu0 0.0
    %237 = vmatprep.subr.mxu0 0.0
    %238 = vmatpush1.msra.mxu0 0.0
    %239 = vmatprep.subr.mxu0 0.0
    %240 = vmatpush1.msra.mxu0 0.0
    %241 = vmatprep.subr.mxu0 0.0
    %242 = vmatpush1.msra.mxu0 0.0
    %243 = vmatprep.subr.mxu0 0.0
    %244 = vmatpush1.msra.mxu0 0.0
    %245 = vmatprep.subr.mxu0 0.0
    %246 = vmatpush1.msra.mxu0 0.0
    %247 = vmatprep.subr.mxu0 0.0
    %248 = vmatpush1.msra.mxu0 0.0
    %249 = vmatprep.subr.mxu0 0.0
    %250 = vmatpush1.msra.mxu0 0.0
    %251 = vmatprep.subr.mxu0 0.0
    %252 = vmatpush1.msra.mxu0 0.0
    %253 = vmatprep.subr.mxu0 0.0
    %254 = vmatpush1.msra.mxu0 0.0
    %255 = vmatprep.subr.mxu0 0.0
    %256 = vmatpush1.msra.mxu0 0.0
    %257 = vmatprep.subr.mxu0 0.0
    %258 = vmatpush1.msra.mxu0 0.0
    %259 = vmatprep.subr.mxu0 0.0
    %260 = vmatpush1.msra.mxu0 0.0
    %261 = vmatprep.subr.mxu0 0.0
    %262 = vmatpush1.msra.mxu0 0.0
    %263 = vmatprep.subr.mxu0 0.0
    %264 = vmatpush1.msra.mxu0 0.0
    %265 = vmatprep.subr.mxu0 0.0
    %266 = vmatpush1.msra.mxu0 0.0
    %267 = vmatprep.subr.mxu0 0.0
    %268 = vmatpush1.msra.mxu0 0.0
    %269 = vmatprep.subr.mxu0 0.0
    %270 = vmatpush1.msra.mxu0 0.0
    %271 = vmatprep.subr.mxu0 0.0
    %272 = vmatpush1.msra.mxu0 0.0
    %273 = vmatprep.subr.mxu0 0.0
    %274 = vmatpush1.msra.mxu0 0.0
    %275 = vmatprep.subr.mxu0 0.0
    %276 = vmatpush1.msra.mxu0 0.0
    %277 = vmatprep.subr.mxu0 0.0
    %278 = vmatpush1.msra.mxu0 0.0
    %279 = vmatprep.subr.mxu0 0.0
    %280 = vmatpush1.msra.mxu0 0.0
    %281 = vmatprep.subr.mxu0 0.0
    %282 = vmatpush1.msra.mxu0 0.0
    %283 = vmatprep.subr.mxu0 0.0
    %284 = vmatpush1.msra.mxu0 0.0
    %285 = vmatprep.mubr.f32.mxu0 0.0
    %286 = vmatmul.mubr.f32.gmra.mrb[0].mxu0 %v128
    %v287 = vpop.f32.mrb[0].mxu0
    %v288 = vadd.f32 %v214, %v287
    %v289 = vpop.f32.mrb[0].mxu0
    %v290 = vadd.f32 %v218, %v289
    %291 = vmatprep.mubr.f32.mxu0 0.0
    %292 = vmatmul.mubr.f32.gmra.mrb[0].mxu0 %v131
    %v293 = vpop.f32.mrb[0].mxu0
    %v294 = vadd.f32 %v214, %v293
    %v295 = vpop.f32.mrb[0].mxu0
    %v296 = vadd.f32 %v218, %v295
    %297 = vdwg.mxu0
    %v298 = vxor.u32 %v200, 2147483648
    %v299 = vxor.u32 %v202, 2147483648
    %v300 = vxor.u32 %v206, 2147483648
    %v301 = vxor.u32 %v208, 2147483648
    %v302 = vmul.f32 %v298, 1.442695
    %v303 = vpow.pop %v302
    %v304 = vmul.f32 %v299, 1.442695
    %v305 = vpow.pop %v304
    %v306 = vmul.f32 %v300, 1.442695
    %v307 = vpow.pop %v306
    %v308 = vmul.f32 %v301, 1.442695
    %v309 = vpow.pop %v308
    %v310 = vadd.f32 %v303, 1.0
    %v311 = vadd.f32 %v305, 1.0
    %v312 = vadd.f32 %v307, 1.0
    %v313 = vadd.f32 %v309, 1.0
    %v314 = vrcp.pop %v310
    %v315 = vmul.f32 1.0, %v314
    %v316 = vrcp.pop %v311
    %v317 = vmul.f32 1.0, %v316
    %v318 = vrcp.pop %v312
    %v319 = vmul.f32 1.0, %v318
    %v320 = vrcp.pop %v313
    %v321 = vmul.f32 1.0, %v320
    %v322 = vtanh.pop %v288
    %v323 = vtanh.pop %v290
    %v324 = vtanh.pop %v294
    %v325 = vtanh.pop %v296
    %v326 = vsub.f32 1.0, %v315
    %v327 = vsub.f32 1.0, %v317
    %v328 = vsub.f32 1.0, %v319
    %v329 = vsub.f32 1.0, %v321
    %v330 = vmul.f32 %v326, %v322
    %v331 = vmul.f32 %v327, %v323
    %v332 = vmul.f32 %v328, %v324
    %v333 = vmul.f32 %v329, %v325
    %v334 = vld [vmem:[%s3] sm:$0xff]
    %v335 = vld [vmem:[%s3 + $0x8] sm:$0xff]
    %v336 = vld [vmem:[%s3 + $0x10] sm:$0xff]
    %v337 = vld [vmem:[%s3 + $0x18] sm:$0xff]
    %v338 = vld [vmem:[%s3 + $0x20] sm:$0xff]
    %v339 = vld [vmem:[%s3 + $0x28] sm:$0xff]
    %v340 = vld [vmem:[%s3 + $0x30] sm:$0xff]
    %v341 = vld [vmem:[%s3 + $0x38] sm:$0xff]
    %v342 = vld [vmem:[%s3 + $0x40] sm:$0xff]
    %v343 = vld [vmem:[%s3 + $0x48] sm:$0xff]
    %v344 = vld [vmem:[%s3 + $0x50] sm:$0xff]
    %v345 = vld [vmem:[%s3 + $0x58] sm:$0xff]
    %v346 = vld [vmem:[%s3 + $0x60] sm:$0xff]
    %v347 = vld [vmem:[%s3 + $0x68] sm:$0xff]
    %v348 = vld [vmem:[%s3 + $0x70] sm:$0xff]
    %v349 = vld [vmem:[%s3 + $0x78] sm:$0xff]
    %v350 = vld [vmem:[%s3 + $0x80] sm:$0xff]
    %v351 = vld [vmem:[%s3 + $0x88] sm:$0xff]
    %v352 = vld [vmem:[%s3 + $0x90] sm:$0xff]
    %v353 = vld [vmem:[%s3 + $0x98] sm:$0xff]
    %v354 = vld [vmem:[%s3 + $0xa0] sm:$0xff]
    %v355 = vld [vmem:[%s3 + $0xa8] sm:$0xff]
    %v356 = vld [vmem:[%s3 + $0xb0] sm:$0xff]
    %v357 = vld [vmem:[%s3 + $0xb8] sm:$0xff]
    %v358 = vld [vmem:[%s3 + $0xc0] sm:$0xff]
    %v359 = vld [vmem:[%s3 + $0xc8] sm:$0xff]
    %v360 = vld [vmem:[%s3 + $0xd0] sm:$0xff]
    %v361 = vld [vmem:[%s3 + $0xd8] sm:$0xff]
    %v362 = vld [vmem:[%s3 + $0xe0] sm:$0xff]
    %v363 = vld [vmem:[%s3 + $0xe8] sm:$0xff]
    %v364 = vld [vmem:[%s3 + $0xf0] sm:$0xff]
    %v365 = vld [vmem:[%s3 + $0xf8] sm:$0xff]
    %366 = vmatprep.subr.mxu0 0.0
    %367 = vmatpush1.msra.mxu0 %v334
    %368 = vmatprep.subr.mxu0 0.0
    %369 = vmatpush1.msra.mxu0 %v335
    %370 = vmatprep.subr.mxu0 0.0
    %371 = vmatpush1.msra.mxu0 %v336
    %372 = vmatprep.subr.mxu0 0.0
    %373 = vmatpush1.msra.mxu0 %v337
    %374 = vmatprep.subr.mxu0 0.0
    %375 = vmatpush1.msra.mxu0 %v338
    %376 = vmatprep.subr.mxu0 0.0
    %377 = vmatpush1.msra.mxu0 %v339
    %378 = vmatprep.subr.mxu0 0.0
    %379 = vmatpush1.msra.mxu0 %v340
    %380 = vmatprep.subr.mxu0 0.0
    %381 = vmatpush1.msra.mxu0 %v341
    %382 = vmatprep.subr.mxu0 0.0
    %383 = vmatpush1.msra.mxu0 %v342
    %384 = vmatprep.subr.mxu0 0.0
    %385 = vmatpush1.msra.mxu0 %v343
    %386 = vmatprep.subr.mxu0 0.0
    %387 = vmatpush1.msra.mxu0 %v344
    %388 = vmatprep.subr.mxu0 0.0
    %389 = vmatpush1.msra.mxu0 %v345
    %390 = vmatprep.subr.mxu0 0.0
    %391 = vmatpush1.msra.mxu0 %v346
    %392 = vmatprep.subr.mxu0 0.0
    %393 = vmatpush1.msra.mxu0 %v347
    %394 = vmatprep.subr.mxu0 0.0
    %395 = vmatpush1.msra.mxu0 %v348
    %396 = vmatprep.subr.mxu0 0.0
    %397 = vmatpush1.msra.mxu0 %v349
    %398 = vmatprep.subr.mxu0 0.0
    %399 = vmatpush1.msra.mxu0 %v350
    %400 = vmatprep.subr.mxu0 0.0
    %401 = vmatpush1.msra.mxu0 %v351
    %402 = vmatprep.subr.mxu0 0.0
    %403 = vmatpush1.msra.mxu0 %v352
    %404 = vmatprep.subr.mxu0 0.0
    %405 = vmatpush1.msra.mxu0 %v353
    %406 = vmatprep.subr.mxu0 0.0
    %407 = vmatpush1.msra.mxu0 %v354
    %408 = vmatprep.subr.mxu0 0.0
    %409 = vmatpush1.msra.mxu0 %v355
    %410 = vmatprep.subr.mxu0 0.0
    %411 = vmatpush1.msra.mxu0 %v356
    %412 = vmatprep.subr.mxu0 0.0
    %413 = vmatpush1.msra.mxu0 %v357
    %414 = vmatprep.subr.mxu0 0.0
    %415 = vmatpush1.msra.mxu0 %v358
    %416 = vmatprep.subr.mxu0 0.0
    %417 = vmatpush1.msra.mxu0 %v359
    %418 = vmatprep.subr.mxu0 0.0
    %419 = vmatpush1.msra.mxu0 %v360
    %420 = vmatprep.subr.mxu0 0.0
    %421 = vmatpush1.msra.mxu0 %v361
    %422 = vmatprep.subr.mxu0 0.0
    %423 = vmatpush1.msra.mxu0 %v362
    %424 = vmatprep.subr.mxu0 0.0
    %425 = vmatpush1.msra.mxu0 %v363
    %426 = vmatprep.subr.mxu0 0.0
    %427 = vmatpush1.msra.mxu0 %v364
    %428 = vmatprep.subr.mxu0 0.0
    %429 = vmatpush1.msra.mxu0 %v365
    %430 = vmatprep.mubr.f32.mxu0 %v331
    %431 = vmatmul.mubr.f32.gmra.mrb[0].mxu0 %v330
    %v432 = vpop.f32.mrb[0].mxu0
    %v433 = vadd.f32 0.0, %v432
    %v434 = vpop.f32.mrb[0].mxu0
    %435 = vmatprep.mubr.f32.mxu0 %v333
    %436 = vmatmul.mubr.f32.gmra.mrb[0].mxu0 %v332
    %v437 = vpop.f32.mrb[0].mxu0
    %v438 = vadd.f32 0.0, %v437
    %v439 = vpop.f32.mrb[0].mxu0
    %440 = vdwg.mxu0
    %v441 = vmax.f32 %v433, 0.0
    %v442 = vmax.f32 %v438, 0.0
    %v443 = vld [vmem:[%s4] sm:$0xff]
    %v444 = vld [vmem:[%s4 + $0x8] sm:$0xff]
    %v445 = vld [vmem:[%s4 + $0x10] sm:$0xff]
    %v446 = vld [vmem:[%s4 + $0x18] sm:$0xff]
    %v447 = vld [vmem:[%s4 + $0x20] sm:$0x1]
    %v448 = vlaneseq
    %v449 = vshrl.u32 %v448, 7
    %v450 = vsub.s32 0, %v449
    %v451 = vrot.slane %v447, %v450
    %vm452 = vcmask 261120
    %v454 = vsel %vm452, %v441, 0
    %v457 = vsel %vm452, %v442, 0
    %459 = vmatprep.subr.mxu0 0.0
    %460 = vmatpush1.msra.mxu0 %v443
    %461 = vmatprep.subr.mxu0 0.0
    %462 = vmatpush1.msra.mxu0 %v444
    %463 = vmatprep.subr.mxu0 0.0
    %464 = vmatpush1.msra.mxu0 %v445
    %465 = vmatprep.subr.mxu0 0.0
    %466 = vmatpush1.msra.mxu0 %v446
    %467 = vmatprep.subr.mxu0 0.0
    %468 = vmatpush1.msra.mxu0 0.0
    %469 = vmatprep.subr.mxu0 0.0
    %470 = vmatpush1.msra.mxu0 0.0
    %471 = vmatprep.subr.mxu0 0.0
    %472 = vmatpush1.msra.mxu0 0.0
    %473 = vmatprep.subr.mxu0 0.0
    %474 = vmatpush1.msra.mxu0 0.0
    %475 = vmatprep.subr.mxu0 0.0
    %476 = vmatpush1.msra.mxu0 0.0
    %477 = vmatprep.subr.mxu0 0.0
    %478 = vmatpush1.msra.mxu0 0.0
    %479 = vmatprep.subr.mxu0 0.0
    %480 = vmatpush1.msra.mxu0 0.0
    %481 = vmatprep.subr.mxu0 0.0
    %482 = vmatpush1.msra.mxu0 0.0
    %483 = vmatprep.subr.mxu0 0.0
    %484 = vmatpush1.msra.mxu0 0.0
    %485 = vmatprep.subr.mxu0 0.0
    %486 = vmatpush1.msra.mxu0 0.0
    %487 = vmatprep.subr.mxu0 0.0
    %488 = vmatpush1.msra.mxu0 0.0
    %489 = vmatprep.subr.mxu0 0.0
    %490 = vmatpush1.msra.mxu0 0.0
    %491 = vmatprep.subr.mxu0 0.0
    %492 = vmatpush1.msra.mxu0 0.0
    %493 = vmatprep.subr.mxu0 0.0
    %494 = vmatpush1.msra.mxu0 0.0
    %495 = vmatprep.subr.mxu0 0.0
    %496 = vmatpush1.msra.mxu0 0.0
    %497 = vmatprep.subr.mxu0 0.0
    %498 = vmatpush1.msra.mxu0 0.0
    %499 = vmatprep.subr.mxu0 0.0
    %500 = vmatpush1.msra.mxu0 0.0
    %501 = vmatprep.subr.mxu0 0.0
    %502 = vmatpush1.msra.mxu0 0.0
    %503 = vmatprep.subr.mxu0 0.0
    %504 = vmatpush1.msra.mxu0 0.0
    %505 = vmatprep.subr.mxu0 0.0
    %506 = vmatpush1.msra.mxu0 0.0
    %507 = vmatprep.subr.mxu0 0.0
    %508 = vmatpush1.msra.mxu0 0.0
    %509 = vmatprep.subr.mxu0 0.0
    %510 = vmatpush1.msra.mxu0 0.0
    %511 = vmatprep.subr.mxu0 0.0
    %512 = vmatpush1.msra.mxu0 0.0
    %513 = vmatprep.subr.mxu0 0.0
    %514 = vmatpush1.msra.mxu0 0.0
    %515 = vmatprep.subr.mxu0 0.0
    %516 = vmatpush1.msra.mxu0 0.0
    %517 = vmatprep.subr.mxu0 0.0
    %518 = vmatpush1.msra.mxu0 0.0
    %519 = vmatprep.subr.mxu0 0.0
    %520 = vmatpush1.msra.mxu0 0.0
    %521 = vmatprep.subr.mxu0 0.0
    %522 = vmatpush1.msra.mxu0 0.0
    %523 = vmatprep.mubr.f32.mxu0 0.0
    %524 = vmatmul.mubr.f32.gmra.mrb[0].mxu0 %v454
    %v525 = vpop.f32.mrb[0].mxu0
    %v526 = vadd.f32 %v451, %v525
    %v527 = vpop.f32.mrb[0].mxu0
    %528 = vmatprep.mubr.f32.mxu0 0.0
    %529 = vmatmul.mubr.f32.gmra.mrb[0].mxu0 %v457
    %v530 = vpop.f32.mrb[0].mxu0
    %v531 = vadd.f32 %v451, %v530
    %v532 = vpop.f32.mrb[0].mxu0
    %533 = vdwg.mxu0
    %534 = vst [vmem:[#allocation2] sm:$0xff] %v526
    %535 = vst [vmem:[#allocation2 + $0x8] sm:$0xff] %v531
    // Predicated region
    $region22: #{tpu_custom_call.1} parent=1 // pred_check
      _
    $region23: #{tpu_custom_call.1} parent=1 // pred_check_branch
      %537 = sbr.rel (0) target = $region25
    $region24: #{tpu_custom_call.1} parent=1 // pred_region
      %s539 = ssub.s32 256, 256
      %540 = vsyncadd [#allocation3], %s539
      %s541 = sshll.u32 [#allocation2], 4
      %s542 = int_to_ptr.vmem [resolvable:$true] %s541
      %547 = dma.vmem_to_hbm [thread:$0]  %s542, 256, %s5, [#allocation3], 128, 128, 8
    $region25: #{tpu_custom_call.1} parent=1 // pred_fallthru
      _
    // Predicated region
    $region26: #{tpu_custom_call.1} parent=1 // pred_check
      _
    $region27: #{tpu_custom_call.1} parent=1 // pred_check_branch
      %549 = sbr.rel (0) target = $region29
    $region28: #{tpu_custom_call.1} parent=1 // pred_region
      %550 = dma.done [#allocation3], 256
    $region29: #{tpu_custom_call.1} parent=1 // pred_fallthru
      _
    %551 = vsyncpa [#allocation3], 1

</llo_original>
